<compile_context>
chip_gen: v7x
topology: tpu7x:2x2x1
jax: 0.10.0
libtpu: 0.0.40
codegen_flags: <defaults>
</compile_context>

<pallas_src>
import functools

import jax
import jax.numpy as jnp
from jax.experimental import pallas as pl
from jax.experimental.pallas import tpu as pltpu


# -----------------------------------------------------------------------------
# Kernel 1: batch-independent precompute (single invocation).
# -----------------------------------------------------------------------------
def precompute_kernel(cheb_k,
                      nv1_ref, nv2_ref, ne_ref, bpz_ref, bpr_ref, bpu_ref,
                      supp_ref, bz_ref, br_ref, bu_ref):
    nv1 = nv1_ref[...]                    # (N, D)
    nv2 = nv2_ref[...]                    # (D, N)
    N = nv1.shape[0]

    # adaptive adjacency: softmax(relu(nv1 @ nv2), axis=1)
    logits = jnp.maximum(
        jnp.dot(nv1, nv2, preferred_element_type=jnp.float32), 0.0)
    m = jnp.max(logits, axis=1, keepdims=True)
    e = jnp.exp(logits - m)
    s1 = e / jnp.sum(e, axis=1, keepdims=True)          # (N, N)

    # Chebyshev supports S_1 .. S_{K-1}  (S_0 = I is applied implicitly later)
    supp_ref[0] = s1
    if cheb_k > 2:
        row = jax.lax.broadcasted_iota(jnp.int32, (N, N), 0)
        col = jax.lax.broadcasted_iota(jnp.int32, (N, N), 1)
        prev2 = (row == col).astype(jnp.float32)         # S_0 = I
        prev1 = s1
        for k in range(2, cheb_k):
            nxt = 2.0 * jnp.dot(s1, prev1,
                                preferred_element_type=jnp.float32) - prev2
            supp_ref[k - 1] = nxt
            prev2, prev1 = prev1, nxt

    # node-adaptive biases (z / r halves of the gate bias, plus update bias)
    ne = ne_ref[...]                                      # (N, D)
    bz_ref[...] = jnp.dot(ne, bpz_ref[...], preferred_element_type=jnp.float32)
    br_ref[...] = jnp.dot(ne, bpr_ref[...], preferred_element_type=jnp.float32)
    bu_ref[...] = jnp.dot(ne, bpu_ref[...], preferred_element_type=jnp.float32)


# -----------------------------------------------------------------------------
# Kernel 2: streaming AGCRN cell, gridded over batch blocks of size Bt.
# -----------------------------------------------------------------------------
def agcrn_cell_kernel(cheb_k, embed_dim,
                      x_ref, state_ref, supp_ref, nex_ref, neh_ref,
                      wzx_ref, wzh_ref, wrx_ref, wrh_ref, wux_ref, wuh_ref,
                      bz_ref, br_ref, bu_ref, out_ref):
    K, D = cheb_k, embed_dim
    x3 = x_ref[...]                       # (Bt, N, Cx)
    st3 = state_ref[...]                  # (Bt, N, H)
    Bt, N, Cx = x3.shape
    H = st3.shape[-1]

    def dot(a, b):
        return jnp.dot(a, b, preferred_element_type=jnp.float32)

    # Bt-broadcast (sublane concat) of per-node constants -- once per step.
    def over_batch(a):                    # (N, L) -> (Bt*N, L), row = b*N + n
        return jnp.concatenate([a] * Bt, axis=0)

    nex_b = over_batch(nex_ref[...])      # (Bt*N, D*Cx)
    neh_b = over_batch(neh_ref[...])      # (Bt*N, D*H)
    bz_b = over_batch(bz_ref[...])        # (Bt*N, H)
    br_b = over_batch(br_ref[...])
    bu_b = over_batch(bu_ref[...])

    def make_a(feat2, ne_b):
        # A[(b,n), d*C + i] = feat[(b,n), i] * ne[n, d]   (d-major lane tiling)
        return jnp.concatenate([feat2] * D, axis=1) * ne_b

    def propagate(sk, feat3):
        # flat (Bt*N, C): row b*N + n = sum_m sk[n, m] * feat3[b, m, :]
        return jnp.concatenate([dot(sk, feat3[b]) for b in range(Bt)], axis=0)

    x2 = x3.reshape(Bt * N, Cx)
    st2 = st3.reshape(Bt * N, H)

    # ---- gate branch (z = first half, r = second half) + update x-part ------
    a_x = make_a(x2, nex_b)               # identity support, x part
    a_h = make_a(st2, neh_b)              # identity support, state part
    t_z = dot(a_x, wzx_ref[0]) + dot(a_h, wzh_ref[0])
    t_r = dot(a_x, wrx_ref[0]) + dot(a_h, wrh_ref[0])
    t_u = dot(a_x, wux_ref[0])            # x-part of update (shares a_x)
    for k in range(1, K):
        sk = supp_ref[k - 1]                              # (N, N)
        a_x = make_a(propagate(sk, x3), nex_b)
        a_h = make_a(propagate(sk, st3), neh_b)
        t_z = t_z + dot(a_x, wzx_ref[k]) + dot(a_h, wzh_ref[k])
        t_r = t_r + dot(a_x, wrx_ref[k]) + dot(a_h, wrh_ref[k])
        t_u = t_u + dot(a_x, wux_ref[k])

    z = jax.nn.sigmoid(t_z + bz_b)        # (Bt*N, H)
    r = jax.nn.sigmoid(t_r + br_b)

    # ---- update branch: candidate state part uses z*state -------------------
    zs2 = z * st2
    zs3 = zs2.reshape(Bt, N, H)
    t_u = t_u + dot(make_a(zs2, neh_b), wuh_ref[0])
    for k in range(1, K):
        t_u = t_u + dot(make_a(propagate(supp_ref[k - 1], zs3), neh_b),
                        wuh_ref[k])

    hc = jnp.tanh(t_u + bu_b)             # (Bt*N, H)
    h2 = r * st2 + (1.0 - r) * hc
    out_ref[...] = h2.reshape(Bt, N, H).astype(out_ref.dtype)


# -----------------------------------------------------------------------------
# Wrapper
# -----------------------------------------------------------------------------
def _fold_pool(wpool_part):
    # (D, K, C, Co) -> (K, D*C, Co) with w[k, d*C + i, o] = wpool[d, k, i, o]
    D, K, C, Co = wpool_part.shape
    return jnp.transpose(wpool_part, (1, 0, 2, 3)).reshape(K, D * C, Co)


def agcrn_cell_pallas(x, state, nodevec1, nodevec2,
                      gate_weights_pool, gate_bias_pool,
                      update_weights_pool, update_bias_pool,
                      cheb_k):
    B, N, Cx = x.shape
    H = state.shape[-1]
    D = nodevec1.shape[1]
    K = cheb_k
    assert K >= 2, "cheb_k >= 2 required (matches the PyTorch module)"
    Ci = Cx + H
    assert gate_weights_pool.shape == (D, K, Ci, 2 * H)
    assert update_weights_pool.shape == (D, K, Ci, H)
    f32 = jnp.float32
    x = x.astype(f32)
    state = state.astype(f32)

    # ---- parameter-side glue (pure layout, no batch-dependent work) ---------
    ne = nodevec1 + nodevec2.T                            # (N, D)
    ne_rep_x = jnp.repeat(ne, Cx, axis=1)                 # (N, D*Cx), d-major
    ne_rep_h = jnp.repeat(ne, H, axis=1)                  # (N, D*H),  d-major

    gz = gate_weights_pool[..., :H]                       # z half (first)
    gr = gate_weights_pool[..., H:]                       # r half (second)
    wz_x, wz_h = _fold_pool(gz[:, :, :Cx, :]), _fold_pool(gz[:, :, Cx:, :])
    wr_x, wr_h = _fold_pool(gr[:, :, :Cx, :]), _fold_pool(gr[:, :, Cx:, :])
    wu_x = _fold_pool(update_weights_pool[:, :, :Cx, :])
    wu_h = _fold_pool(update_weights_pool[:, :, Cx:, :])
    bp_z, bp_r = gate_bias_pool[:, :H], gate_bias_pool[:, H:]

    # ---- batch-independent precompute (one invocation) ----------------------
    vmem = pl.BlockSpec(memory_space=pltpu.MemorySpace.VMEM)
    supp, bz, br, bu = pl.pallas_call(
        functools.partial(precompute_kernel, K),
        out_shape=(
            jax.ShapeDtypeStruct((K - 1, N, N), f32),
            jax.ShapeDtypeStruct((N, H), f32),
            jax.ShapeDtypeStruct((N, H), f32),
            jax.ShapeDtypeStruct((N, H), f32),
        ),
        in_specs=[vmem] * 6,
        out_specs=(vmem, vmem, vmem, vmem),
    )(nodevec1, nodevec2, ne, bp_z, bp_r, update_bias_pool)

    # ---- batch blocking: largest divisor of B with Bt*N <= ~256 rows --------
    bt_cap = max(1, 256 // N)
    bt = 1
    for cand in range(1, B + 1):
        if B % cand == 0 and cand <= bt_cap:
            bt = cand
    grid = (B // bt,)

    def run(single_buffer_residents):
        mode = pl.Buffered(1) if single_buffer_residents else None

        def resident(shape):
            zeros = (0,) * len(shape)
            idx = lambda b, _z=zeros: _z
            if mode is None:
                return pl.BlockSpec(shape, idx)
            return pl.BlockSpec(shape, idx, pipeline_mode=mode)

        grid_spec = pltpu.PrefetchScalarGridSpec(
            num_scalar_prefetch=0,
            grid=grid,
            in_specs=[
                pl.BlockSpec((bt, N, Cx), lambda b: (b, 0, 0)),  # x (streamed)
                pl.BlockSpec((bt, N, H), lambda b: (b, 0, 0)),   # state
                resident((K - 1, N, N)),                         # supports
                resident((N, D * Cx)),                           # ne_rep_x
                resident((N, D * H)),                            # ne_rep_h
                resident((K, D * Cx, H)),                        # wz_x
                resident((K, D * H, H)),                         # wz_h
                resident((K, D * Cx, H)),                        # wr_x
                resident((K, D * H, H)),                         # wr_h
                resident((K, D * Cx, H)),                        # wu_x
                resident((K, D * H, H)),                         # wu_h
                resident((N, H)),                                # bias z
                resident((N, H)),                                # bias r
                resident((N, H)),                                # bias u
            ],
            out_specs=pl.BlockSpec((bt, N, H), lambda b: (b, 0, 0)),
        )
        out = pl.pallas_call(
            functools.partial(agcrn_cell_kernel, K, D),
            out_shape=jax.ShapeDtypeStruct((B, N, H), f32),
            grid_spec=grid_spec,
            compiler_params=pltpu.CompilerParams(
                dimension_semantics=("parallel",),
                vmem_limit_bytes=32 * 1024 * 1024),
        )(x, state, supp, ne_rep_x, ne_rep_h,
          wz_x, wz_h, wr_x, wr_h, wu_x, wu_h, bz, br, bu)
        return jax.block_until_ready(out)

    try:
        # Single-buffer the resident constants (halves their VMEM footprint).
        return run(True)
    except Exception:
        # Fallback: default double-buffering if pipeline_mode is unsupported.
        return run(False)


# -----------------------------------------------------------------------------
# Plain-JAX reference (transcription of the PyTorch forward) for validation.
# -----------------------------------------------------------------------------
_HI = jax.lax.Precision.HIGHEST


def avwgcn_reference(x, nodevec1, nodevec2, weights_pool, bias_pool, cheb_k):
    N = nodevec1.shape[0]
    supports = jax.nn.softmax(
        jax.nn.relu(jnp.dot(nodevec1, nodevec2, precision=_HI)), axis=1)
    support_set = [jnp.eye(N, dtype=jnp.float32), supports]
    for _ in range(2, cheb_k):
        support_set.append(
            2.0 * jnp.dot(supports, support_set[-1], precision=_HI)
            - support_set[-2])
    supports = jnp.stack(support_set, axis=0)
    ne = nodevec1 + nodevec2.T
    weights = jnp.einsum('nd,dkio->nkio', ne, weights_pool, precision=_HI)
    bias = jnp.dot(ne, bias_pool, precision=_HI)
    x_g = jnp.einsum('knm,bmc->bknc', supports, x, precision=_HI)
    x_g = jnp.transpose(x_g, (0, 2, 1, 3))
    return jnp.einsum('bnki,nkio->bno', x_g, weights, precision=_HI) + bias


def agcrn_cell_reference(x, state, nodevec1, nodevec2,
                         gate_wpool, gate_bpool, update_wpool, update_bpool,
                         cheb_k):
    H = state.shape[-1]
    ins = jnp.concatenate([x, state], axis=-1)
    zr = jax.nn.sigmoid(
        avwgcn_reference(ins, nodevec1, nodevec2, gate_wpool, gate_bpool, cheb_k))
    z, r = zr[..., :H], zr[..., H:]
    cand = jnp.concatenate([x, z * state], axis=-1)
    hc = jnp.tanh(
        avwgcn_reference(cand, nodevec1, nodevec2, update_wpool, update_bpool,
                         cheb_k))
    return r * state + (1.0 - r) * hc


if __name__ == "__main__":
    # Shapes consistent with AGCRNCell(node_num=16, dim_in=4, dim_out=32,
    # cheb_k=3, embed_dim=8), batch=2.
    B, N = 2, 16
    dim_in, hidden_dim = 4, 32
    cheb_k, embed_dim = 3, 8
    ci = dim_in + hidden_dim

    key = jax.random.PRNGKey(0)
    ks = jax.random.split(key, 8)
    x = jax.random.normal(ks[0], (B, N, dim_in), dtype=jnp.float32)
    state = jax.random.normal(ks[1], (B, N, hidden_dim), dtype=jnp.float32)
    nodevec1 = jax.random.normal(ks[2], (N, embed_dim), dtype=jnp.float32)
    nodevec2 = jax.random.normal(ks[3], (embed_dim, N), dtype=jnp.float32)
    gate_weights_pool = 0.1 * jax.random.normal(
        ks[4], (embed_dim, cheb_k, ci, 2 * hidden_dim), dtype=jnp.float32)
    gate_bias_pool = 0.1 * jax.random.normal(
        ks[5], (embed_dim, 2 * hidden_dim), dtype=jnp.float32)
    update_weights_pool = 0.1 * jax.random.normal(
        ks[6], (embed_dim, cheb_k, ci, hidden_dim), dtype=jnp.float32)
    update_bias_pool = 0.1 * jax.random.normal(
        ks[7], (embed_dim, hidden_dim), dtype=jnp.float32)

    h = agcrn_cell_pallas(x, state, nodevec1, nodevec2,
                          gate_weights_pool, gate_bias_pool,
                          update_weights_pool, update_bias_pool, cheb_k)
    h = jax.block_until_ready(h)

    ref = agcrn_cell_reference(x, state, nodevec1, nodevec2,
                               gate_weights_pool, gate_bias_pool,
                               update_weights_pool, update_bias_pool, cheb_k)
    ref = jax.block_until_ready(ref)

    assert h.shape == (B, N, hidden_dim)
    err = float(jnp.max(jnp.abs(h - ref)))
    # Kernel matmuls use the default TPU f32 precision while the reference uses
    # Precision.HIGHEST; tolerance relaxed slightly per review's note.
    assert jnp.allclose(h, ref, atol=1e-3, rtol=1e-3), f"max abs err {err}"
    print("KERNEL_OK")
</pallas_src>

<mosaic_0001>
module attributes {stable_mosaic.version = 11 : i64} {
  func.func @precompute_kernel(%arg0: memref<16x8xf32, #tpu.memory_space<vmem>>, %arg1: memref<8x16xf32, #tpu.memory_space<vmem>>, %arg2: memref<16x8xf32, #tpu.memory_space<vmem>>, %arg3: memref<8x32xf32, #tpu.memory_space<vmem>>, %arg4: memref<8x32xf32, #tpu.memory_space<vmem>>, %arg5: memref<8x32xf32, #tpu.memory_space<vmem>>, %arg6: memref<2x16x16xf32, #tpu.memory_space<vmem>>, %arg7: memref<16x32xf32, #tpu.memory_space<vmem>>, %arg8: memref<16x32xf32, #tpu.memory_space<vmem>>, %arg9: memref<16x32xf32, #tpu.memory_space<vmem>>) attributes {dimension_semantics = [], scalar_prefetch = 0 : i64, scratch_operands = 0 : i64, tpu.core_type = #tpu.core_type<tc>} {
    %c0 = arith.constant 0 : index
    %c0_0 = arith.constant 0 : index
    %0 = vector.load %arg0[%c0, %c0_0] : memref<16x8xf32, #tpu.memory_space<vmem>>, vector<16x8xf32>
    %c0_1 = arith.constant 0 : index
    %c0_2 = arith.constant 0 : index
    %1 = vector.load %arg1[%c0_1, %c0_2] : memref<8x16xf32, #tpu.memory_space<vmem>>, vector<8x16xf32>
    %cst = arith.constant dense<0.000000e+00> : vector<16x16xf32>
    %2 = tpu.matmul %0, %1, %cst {dimension_numbers = #tpu.dot_dimension_numbers<[1], [0], [0], [1], [0, 0, 1, 1], [], []>} : vector<16x8xf32>, vector<8x16xf32>, vector<16x16xf32> -> vector<16x16xf32>
    %cst_3 = arith.constant 0.000000e+00 : f32
    %3 = vector.broadcast %cst_3 : f32 to vector<16x16xf32>
    %4 = arith.maximumf %2, %3 : vector<16x16xf32>
    %cst_4 = arith.constant dense<0xFF800000> : vector<16xf32>
    %5 = vector.multi_reduction <maximumf>, %4, %cst_4 [1] : vector<16x16xf32> to vector<16xf32>
    %6 = vector.shape_cast %5 : vector<16xf32> to vector<16x1xf32>
    %7 = vector.broadcast %6 : vector<16x1xf32> to vector<16x16xf32>
    %8 = arith.subf %4, %7 : vector<16x16xf32>
    %9 = math.exp %8 : vector<16x16xf32>
    %cst_5 = arith.constant dense<0.000000e+00> : vector<16xf32>
    %10 = vector.multi_reduction <add>, %9, %cst_5 [1] : vector<16x16xf32> to vector<16xf32>
    %11 = vector.shape_cast %10 : vector<16xf32> to vector<16x1xf32>
    %12 = vector.broadcast %11 : vector<16x1xf32> to vector<16x16xf32>
    %13 = arith.divf %9, %12 : vector<16x16xf32>
    %c0_6 = arith.constant 0 : index
    %c0_7 = arith.constant 0 : index
    %c0_8 = arith.constant 0 : index
    %14 = vector.load %arg6[%c0_6, %c0_7, %c0_8] : memref<2x16x16xf32, #tpu.memory_space<vmem>>, vector<1x16x16xf32>
    %15 = vector.shape_cast %14 : vector<1x16x16xf32> to vector<16x16xf32>
    %16 = vector.shape_cast %13 : vector<16x16xf32> to vector<1x16x16xf32>
    tpu.vector_store %arg6[%c0_6, %c0_7, %c0_8], %16 {strides = array<i32>} : memref<2x16x16xf32, #tpu.memory_space<vmem>>, vector<1x16x16xf32>,
    %17 = tpu.iota {dimensions = array<i32: 0>} : vector<16x16xi32>
    %18 = tpu.iota {dimensions = array<i32: 1>} : vector<16x16xi32>
    %19 = arith.cmpi eq, %17, %18 : vector<16x16xi32>
    %20 = arith.extui %19 : vector<16x16xi1> to vector<16x16xi32>
    %21 = arith.sitofp %20 : vector<16x16xi32> to vector<16x16xf32>
    %cst_9 = arith.constant dense<0.000000e+00> : vector<16x16xf32>
    %22 = tpu.matmul %13, %13, %cst_9 {dimension_numbers = #tpu.dot_dimension_numbers<[1], [0], [0], [1], [0, 0, 1, 1], [], []>} : vector<16x16xf32>, vector<16x16xf32>, vector<16x16xf32> -> vector<16x16xf32>
    %cst_10 = arith.constant 2.000000e+00 : f32
    %23 = vector.broadcast %cst_10 : f32 to vector<16x16xf32>
    %24 = arith.mulf %23, %22 : vector<16x16xf32>
    %25 = arith.subf %24, %21 : vector<16x16xf32>
    %c1 = arith.constant 1 : index
    %c0_11 = arith.constant 0 : index
    %c0_12 = arith.constant 0 : index
    %26 = vector.load %arg6[%c1, %c0_11, %c0_12] : memref<2x16x16xf32, #tpu.memory_space<vmem>>, vector<1x16x16xf32>
    %27 = vector.shape_cast %26 : vector<1x16x16xf32> to vector<16x16xf32>
    %28 = vector.shape_cast %25 : vector<16x16xf32> to vector<1x16x16xf32>
    tpu.vector_store %arg6[%c1, %c0_11, %c0_12], %28 {strides = array<i32>} : memref<2x16x16xf32, #tpu.memory_space<vmem>>, vector<1x16x16xf32>,
    %c0_13 = arith.constant 0 : index
    %c0_14 = arith.constant 0 : index
    %29 = vector.load %arg2[%c0_13, %c0_14] : memref<16x8xf32, #tpu.memory_space<vmem>>, vector<16x8xf32>
    %c0_15 = arith.constant 0 : index
    %c0_16 = arith.constant 0 : index
    %30 = vector.load %arg3[%c0_15, %c0_16] : memref<8x32xf32, #tpu.memory_space<vmem>>, vector<8x32xf32>
    %cst_17 = arith.constant dense<0.000000e+00> : vector<16x32xf32>
    %31 = tpu.matmul %29, %30, %cst_17 {dimension_numbers = #tpu.dot_dimension_numbers<[1], [0], [0], [1], [0, 0, 1, 1], [], []>} : vector<16x8xf32>, vector<8x32xf32>, vector<16x32xf32> -> vector<16x32xf32>
    %c0_18 = arith.constant 0 : index
    %c0_19 = arith.constant 0 : index
    %32 = vector.load %arg7[%c0_18, %c0_19] : memref<16x32xf32, #tpu.memory_space<vmem>>, vector<16x32xf32>
    tpu.vector_store %arg7[%c0_18, %c0_19], %31 {strides = array<i32>} : memref<16x32xf32, #tpu.memory_space<vmem>>, vector<16x32xf32>,
    %c0_20 = arith.constant 0 : index
    %c0_21 = arith.constant 0 : index
    %33 = vector.load %arg4[%c0_20, %c0_21] : memref<8x32xf32, #tpu.memory_space<vmem>>, vector<8x32xf32>
    %cst_22 = arith.constant dense<0.000000e+00> : vector<16x32xf32>
    %34 = tpu.matmul %29, %33, %cst_22 {dimension_numbers = #tpu.dot_dimension_numbers<[1], [0], [0], [1], [0, 0, 1, 1], [], []>} : vector<16x8xf32>, vector<8x32xf32>, vector<16x32xf32> -> vector<16x32xf32>
    %c0_23 = arith.constant 0 : index
    %c0_24 = arith.constant 0 : index
    %35 = vector.load %arg8[%c0_23, %c0_24] : memref<16x32xf32, #tpu.memory_space<vmem>>, vector<16x32xf32>
    tpu.vector_store %arg8[%c0_23, %c0_24], %34 {strides = array<i32>} : memref<16x32xf32, #tpu.memory_space<vmem>>, vector<16x32xf32>,
    %c0_25 = arith.constant 0 : index
    %c0_26 = arith.constant 0 : index
    %36 = vector.load %arg5[%c0_25, %c0_26] : memref<8x32xf32, #tpu.memory_space<vmem>>, vector<8x32xf32>
    %cst_27 = arith.constant dense<0.000000e+00> : vector<16x32xf32>
    %37 = tpu.matmul %29, %36, %cst_27 {dimension_numbers = #tpu.dot_dimension_numbers<[1], [0], [0], [1], [0, 0, 1, 1], [], []>} : vector<16x8xf32>, vector<8x32xf32>, vector<16x32xf32> -> vector<16x32xf32>
    %c0_28 = arith.constant 0 : index
    %c0_29 = arith.constant 0 : index
    %38 = vector.load %arg9[%c0_28, %c0_29] : memref<16x32xf32, #tpu.memory_space<vmem>>, vector<16x32xf32>
    tpu.vector_store %arg9[%c0_28, %c0_29], %37 {strides = array<i32>} : memref<16x32xf32, #tpu.memory_space<vmem>>, vector<16x32xf32>,
    return
  }
}

</mosaic_0001>

<llo_original>
// kernel: tpu_custom_call.1
$region0: #{tpu_custom_call.1}
  #allocation0 [shape = 'u32[]', space=smem, size = 0x4, offset = 0x4, fixed_abs, tag = 'smem constant byte address 0x4 - core index']
  #allocation1 [shape = 'u32[144,128]{1,0:T(1,128)}', space=vmem, size = 0x12000, scoped, tag = 'internal scratch']
  %s0 = inlined_call_operand.vmem [shape: f32[16,8], index: 0, kind: input, shape index: {}]
  %s1 = inlined_call_operand.vmem [shape: f32[8,16], index: 1, kind: input, shape index: {}]
  %s2 = inlined_call_operand.vmem [shape: f32[16,8], index: 2, kind: input, shape index: {}]
  %s3 = inlined_call_operand.vmem [shape: f32[8,32], index: 3, kind: input, shape index: {}]
  %s4 = inlined_call_operand.vmem [shape: f32[8,32], index: 4, kind: input, shape index: {}]
  %s5 = inlined_call_operand.vmem [shape: f32[8,32], index: 5, kind: input, shape index: {}]
  %s6 = inlined_call_operand.hbm [shape: f32[2,16,16], index: 6, kind: output, shape index: {0}]
  %s7 = inlined_call_operand.hbm [shape: f32[16,32], index: 7, kind: output, shape index: {1}]
  %s8 = inlined_call_operand.hbm [shape: f32[16,32], index: 8, kind: output, shape index: {2}]
  %s9 = inlined_call_operand.hbm [shape: f32[16,32], index: 9, kind: output, shape index: {3}]
  %10 = xla_tuple %s6, %s7, %s8, %s9
  %s11 = sld [smem:[#allocation0]]
  $region58: #{tpu_custom_call.1} parent=0
    _
  %s13 = ssub.s32 1, %s11
  %s14 = scalar_select 0, %s13, %s11
  $region1: #{tpu_custom_call.1} parent=0
    #allocation2 [shape = 'u8[16384]{0}', space=vmem, size = 0x4000, scoped, tag = 'output window, operand 0, single buffered']
    #allocation3 [shape = 's32[1]{0}', space=sflag, size = 0x4, scoped, tag = 'scoped memory for tpu_custom_call.1']
    #allocation4 [shape = 'u8[8192]{0}', space=vmem, size = 0x2000, scoped, tag = 'output window, operand 1, single buffered']
    #allocation5 [shape = 's32[1]{0}', space=sflag, size = 0x4, scoped, tag = 'scoped memory for tpu_custom_call.1']
    #allocation6 [shape = 'u8[8192]{0}', space=vmem, size = 0x2000, scoped, tag = 'output window, operand 2, single buffered']
    #allocation7 [shape = 'u8[8192]{0}', space=vmem, size = 0x2000, scoped, tag = 'output window, operand 3, single buffered']
    #allocation8 [shape = 's32[1]{0}', space=sflag, size = 0x4, scoped, tag = 'scoped memory for tpu_custom_call.1']
    %15 = vsyncpa [#allocation3], 0
    %16 = vsyncpa [#allocation5], 0
    %17 = vsyncpa [#allocation8], 0
    // Predicated region
    $region2: #{tpu_custom_call.1} parent=1 // pred_check
      _
    $region3: #{tpu_custom_call.1} parent=1 // pred_check_branch
      %19 = sbr.rel (0) target = $region5
    $region4: #{tpu_custom_call.1} parent=1 // pred_region
      _
    $region5: #{tpu_custom_call.1} parent=1 // pred_fallthru
      _
    // Predicated region
    $region6: #{tpu_custom_call.1} parent=1 // pred_check
      _
    $region7: #{tpu_custom_call.1} parent=1 // pred_check_branch
      %21 = sbr.rel (0) target = $region9
    $region8: #{tpu_custom_call.1} parent=1 // pred_region
      _
    $region9: #{tpu_custom_call.1} parent=1 // pred_fallthru
      _
    // Predicated region
    $region10: #{tpu_custom_call.1} parent=1 // pred_check
      _
    $region11: #{tpu_custom_call.1} parent=1 // pred_check_branch
      %23 = sbr.rel (0) target = $region13
    $region12: #{tpu_custom_call.1} parent=1 // pred_region
      _
    $region13: #{tpu_custom_call.1} parent=1 // pred_fallthru
      _
    // Predicated region
    $region14: #{tpu_custom_call.1} parent=1 // pred_check
      _
    $region15: #{tpu_custom_call.1} parent=1 // pred_check_branch
      %25 = sbr.rel (0) target = $region17
    $region16: #{tpu_custom_call.1} parent=1 // pred_region
      _
    $region17: #{tpu_custom_call.1} parent=1 // pred_fallthru
      _
    // Predicated region
    $region18: #{tpu_custom_call.1} parent=1 // pred_check
      _
    $region19: #{tpu_custom_call.1} parent=1 // pred_check_branch
      %27 = sbr.rel (0) target = $region21
    $region20: #{tpu_custom_call.1} parent=1 // pred_region
      _
    $region21: #{tpu_custom_call.1} parent=1 // pred_fallthru
      _
    // Predicated region
    $region22: #{tpu_custom_call.1} parent=1 // pred_check
      _
    $region23: #{tpu_custom_call.1} parent=1 // pred_check_branch
      %29 = sbr.rel (0) target = $region25
    $region24: #{tpu_custom_call.1} parent=1 // pred_region
      _
    $region25: #{tpu_custom_call.1} parent=1 // pred_fallthru
      _
    %v30 = vld [vmem:[%s0] sm:$0xff]
    %v31 = vld [vmem:[%s0 + $0x8] sm:$0xff]
    %v32 = vld [vmem:[%s1] sm:$0xff]
    %vm33 = vcmask 64512
    %v35 = vsel %vm33, %v30, 0
    %v38 = vsel %vm33, %v31, 0
    %40 = vmatprep.subr.mxu0 0.0
    %41 = vmatpush1.msra.mxu0 %v32
    %42 = vmatprep.subr.mxu0 0.0
    %43 = vmatpush1.msra.mxu0 0.0
    %44 = vmatprep.subr.mxu0 0.0
    %45 = vmatpush1.msra.mxu0 0.0
    %46 = vmatprep.subr.mxu0 0.0
    %47 = vmatpush1.msra.mxu0 0.0
    %48 = vmatprep.subr.mxu0 0.0
    %49 = vmatpush1.msra.mxu0 0.0
    %50 = vmatprep.subr.mxu0 0.0
    %51 = vmatpush1.msra.mxu0 0.0
    %52 = vmatprep.subr.mxu0 0.0
    %53 = vmatpush1.msra.mxu0 0.0
    %54 = vmatprep.subr.mxu0 0.0
    %55 = vmatpush1.msra.mxu0 0.0
    %56 = vmatprep.subr.mxu0 0.0
    %57 = vmatpush1.msra.mxu0 0.0
    %58 = vmatprep.subr.mxu0 0.0
    %59 = vmatpush1.msra.mxu0 0.0
    %60 = vmatprep.subr.mxu0 0.0
    %61 = vmatpush1.msra.mxu0 0.0
    %62 = vmatprep.subr.mxu0 0.0
    %63 = vmatpush1.msra.mxu0 0.0
    %64 = vmatprep.subr.mxu0 0.0
    %65 = vmatpush1.msra.mxu0 0.0
    %66 = vmatprep.subr.mxu0 0.0
    %67 = vmatpush1.msra.mxu0 0.0
    %68 = vmatprep.subr.mxu0 0.0
    %69 = vmatpush1.msra.mxu0 0.0
    %70 = vmatprep.subr.mxu0 0.0
    %71 = vmatpush1.msra.mxu0 0.0
    %72 = vmatprep.subr.mxu0 0.0
    %73 = vmatpush1.msra.mxu0 0.0
    %74 = vmatprep.subr.mxu0 0.0
    %75 = vmatpush1.msra.mxu0 0.0
    %76 = vmatprep.subr.mxu0 0.0
    %77 = vmatpush1.msra.mxu0 0.0
    %78 = vmatprep.subr.mxu0 0.0
    %79 = vmatpush1.msra.mxu0 0.0
    %80 = vmatprep.subr.mxu0 0.0
    %81 = vmatpush1.msra.mxu0 0.0
    %82 = vmatprep.subr.mxu0 0.0
    %83 = vmatpush1.msra.mxu0 0.0
    %84 = vmatprep.subr.mxu0 0.0
    %85 = vmatpush1.msra.mxu0 0.0
    %86 = vmatprep.subr.mxu0 0.0
    %87 = vmatpush1.msra.mxu0 0.0
    %88 = vmatprep.subr.mxu0 0.0
    %89 = vmatpush1.msra.mxu0 0.0
    %90 = vmatprep.subr.mxu0 0.0
    %91 = vmatpush1.msra.mxu0 0.0
    %92 = vmatprep.subr.mxu0 0.0
    %93 = vmatpush1.msra.mxu0 0.0
    %94 = vmatprep.subr.mxu0 0.0
    %95 = vmatpush1.msra.mxu0 0.0
    %96 = vmatprep.subr.mxu0 0.0
    %97 = vmatpush1.msra.mxu0 0.0
    %98 = vmatprep.subr.mxu0 0.0
    %99 = vmatpush1.msra.mxu0 0.0
    %100 = vmatprep.subr.mxu0 0.0
    %101 = vmatpush1.msra.mxu0 0.0
    %102 = vmatprep.subr.mxu0 0.0
    %103 = vmatpush1.msra.mxu0 0.0
    %104 = vmatprep.mubr.f32.mxu0 0.0
    %105 = vmatmul.mubr.f32.gmra.mrb[0].mxu0 %v35
    %v106 = vpop.f32.mrb[0].mxu0
    %v107 = vadd.f32 0.0, %v106
    %v108 = vpop.f32.mrb[0].mxu0
    %109 = vmatprep.mubr.f32.mxu0 0.0
    %110 = vmatmul.mubr.f32.gmra.mrb[0].mxu0 %v38
    %v111 = vpop.f32.mrb[0].mxu0
    %v112 = vadd.f32 0.0, %v111
    %v113 = vpop.f32.mrb[0].mxu0
    %114 = vdwg.mxu0
    %v115 = vmax.f32 %v107, 0.0
    %v116 = vmax.f32 %v112, 0.0
    %vm117 = vcmask 130048
    %v118 = vsel %vm117, %v115, -inf
    %119 = vmax.xlane.f32.xlu0 %v118
    %v120 = vpop.xlane.xlu0 %119
    %v121 = vsel %vm117, %v116, -inf
    %122 = vmax.xlane.f32.xlu0 %v121
    %v123 = vpop.xlane.xlu0 %122
    %v124 = vsub.f32 %v115, %v120
    %v125 = vsub.f32 %v116, %v123
    %v126 = vmul.f32 %v124, 1.442695
    %v127 = vpow.pop %v126
    %v128 = vmul.f32 %v125, 1.442695
    %v129 = vpow.pop %v128
    %v130 = vsel %vm117, %v127, 0.0
    %131 = vadd.xlane.f32.xlu0 %v130
    %v132 = vpop.xlane.xlu0 %131
    %v133 = vsel %vm117, %v129, 0.0
    %134 = vadd.xlane.f32.xlu0 %v133
    %v135 = vpop.xlane.xlu0 %134
    %v136 = vrcp.pop %v132
    %v137 = vmul.f32 %v127, %v136
    %v138 = vrcp.pop %v135
    %v139 = vmul.f32 %v129, %v138
    %140 = vst.msk [vmem:[#allocation2] sm:$0xff] %vm117, %v137
    %141 = vst.msk [vmem:[#allocation2 + $0x8] sm:$0xff] %vm117, %v139
    %v142 = vlaneseq
    %v143 = vshrl.u32 %v142, 7
    %v144 = vadd.s32 %v143, 8
    %v145 = vlaneseq
    %v146 = vand.u32 %v145, 127
    %vm147 = vcmp.eq.s32.totalorder %v143, %v146
    %vm148 = vcmp.eq.s32.totalorder %v144, %v146
    %v149 = vsel %vm147, 1, 0
    %v150 = vsel %vm148, 1, 0
    %v151 = vcvt.s32.f32 %v149
    %v152 = vcvt.s32.f32 %v150
    %v154 = vsel %vm117, %v137, 0
    %v157 = vsel %vm117, %v139, 0
    %159 = vmatprep.subr.mxu0 0.0
    %160 = vmatpush1.msra.mxu0 %v137
    %161 = vmatprep.subr.mxu0 0.0
    %162 = vmatpush1.msra.mxu0 %v139
    %163 = vmatprep.subr.mxu0 0.0
    %164 = vmatpush1.msra.mxu0 0.0
    %165 = vmatprep.subr.mxu0 0.0
    %166 = vmatpush1.msra.mxu0 0.0
    %167 = vmatprep.subr.mxu0 0.0
    %168 = vmatpush1.msra.mxu0 0.0
    %169 = vmatprep.subr.mxu0 0.0
    %170 = vmatpush1.msra.mxu0 0.0
    %171 = vmatprep.subr.mxu0 0.0
    %172 = vmatpush1.msra.mxu0 0.0
    %173 = vmatprep.subr.mxu0 0.0
    %174 = vmatpush1.msra.mxu0 0.0
    %175 = vmatprep.subr.mxu0 0.0
    %176 = vmatpush1.msra.mxu0 0.0
    %177 = vmatprep.subr.mxu0 0.0
    %178 = vmatpush1.msra.mxu0 0.0
    %179 = vmatprep.subr.mxu0 0.0
    %180 = vmatpush1.msra.mxu0 0.0
    %181 = vmatprep.subr.mxu0 0.0
    %182 = vmatpush1.msra.mxu0 0.0
    %183 = vmatprep.subr.mxu0 0.0
    %184 = vmatpush1.msra.mxu0 0.0
    %185 = vmatprep.subr.mxu0 0.0
    %186 = vmatpush1.msra.mxu0 0.0
    %187 = vmatprep.subr.mxu0 0.0
    %188 = vmatpush1.msra.mxu0 0.0
    %189 = vmatprep.subr.mxu0 0.0
    %190 = vmatpush1.msra.mxu0 0.0
    %191 = vmatprep.subr.mxu0 0.0
    %192 = vmatpush1.msra.mxu0 0.0
    %193 = vmatprep.subr.mxu0 0.0
    %194 = vmatpush1.msra.mxu0 0.0
    %195 = vmatprep.subr.mxu0 0.0
    %196 = vmatpush1.msra.mxu0 0.0
    %197 = vmatprep.subr.mxu0 0.0
    %198 = vmatpush1.msra.mxu0 0.0
    %199 = vmatprep.subr.mxu0 0.0
    %200 = vmatpush1.msra.mxu0 0.0
    %201 = vmatprep.subr.mxu0 0.0
    %202 = vmatpush1.msra.mxu0 0.0
    %203 = vmatprep.subr.mxu0 0.0
    %204 = vmatpush1.msra.mxu0 0.0
    %205 = vmatprep.subr.mxu0 0.0
    %206 = vmatpush1.msra.mxu0 0.0
    %207 = vmatprep.subr.mxu0 0.0
    %208 = vmatpush1.msra.mxu0 0.0
    %209 = vmatprep.subr.mxu0 0.0
    %210 = vmatpush1.msra.mxu0 0.0
    %211 = vmatprep.subr.mxu0 0.0
    %212 = vmatpush1.msra.mxu0 0.0
    %213 = vmatprep.subr.mxu0 0.0
    %214 = vmatpush1.msra.mxu0 0.0
    %215 = vmatprep.subr.mxu0 0.0
    %216 = vmatpush1.msra.mxu0 0.0
    %217 = vmatprep.subr.mxu0 0.0
    %218 = vmatpush1.msra.mxu0 0.0
    %219 = vmatprep.subr.mxu0 0.0
    %220 = vmatpush1.msra.mxu0 0.0
    %221 = vmatprep.subr.mxu0 0.0
    %222 = vmatpush1.msra.mxu0 0.0
    %223 = vmatprep.mubr.f32.mxu0 0.0
    %224 = vmatmul.mubr.f32.gmra.mrb[0].mxu0 %v154
    %v225 = vpop.f32.mrb[0].mxu0
    %v226 = vadd.f32 0.0, %v225
    %v227 = vpop.f32.mrb[0].mxu0
    %228 = vmatprep.mubr.f32.mxu0 0.0
    %229 = vmatmul.mubr.f32.gmra.mrb[0].mxu0 %v157
    %v230 = vpop.f32.mrb[0].mxu0
    %v231 = vadd.f32 0.0, %v230
    %v232 = vpop.f32.mrb[0].mxu0
    %233 = vdwg.mxu0
    %v234 = vmul.f32 %v226, 2.0
    %v235 = vmul.f32 %v231, 2.0
    %v236 = vsub.f32 %v234, %v151
    %v237 = vsub.f32 %v235, %v152
    %s238 = scalar_lea.vmem [#allocation2], 16
    %239 = vst.msk [vmem:[%s238] sm:$0xff] %vm117, %v236
    %240 = vst.msk [vmem:[%s238 + $0x8] sm:$0xff] %vm117, %v237
    %v241 = vld [vmem:[%s2] sm:$0xff]
    %v242 = vld [vmem:[%s2 + $0x8] sm:$0xff]
    %v243 = vld [vmem:[%s3] sm:$0xff]
    %v245 = vsel %vm33, %v241, 0
    %v248 = vsel %vm33, %v242, 0
    %250 = vmatprep.subr.mxu0 0.0
    %251 = vmatpush1.msra.mxu0 %v243
    %252 = vmatprep.subr.mxu0 0.0
    %253 = vmatpush1.msra.mxu0 0.0
    %254 = vmatprep.subr.mxu0 0.0
    %255 = vmatpush1.msra.mxu0 0.0
    %256 = vmatprep.subr.mxu0 0.0
    %257 = vmatpush1.msra.mxu0 0.0
    %258 = vmatprep.subr.mxu0 0.0
    %259 = vmatpush1.msra.mxu0 0.0
    %260 = vmatprep.subr.mxu0 0.0
    %261 = vmatpush1.msra.mxu0 0.0
    %262 = vmatprep.subr.mxu0 0.0
    %263 = vmatpush1.msra.mxu0 0.0
    %264 = vmatprep.subr.mxu0 0.0
    %265 = vmatpush1.msra.mxu0 0.0
    %266 = vmatprep.subr.mxu0 0.0
    %267 = vmatpush1.msra.mxu0 0.0
    %268 = vmatprep.subr.mxu0 0.0
    %269 = vmatpush1.msra.mxu0 0.0
    %270 = vmatprep.subr.mxu0 0.0
    %271 = vmatpush1.msra.mxu0 0.0
    %272 = vmatprep.subr.mxu0 0.0
    %273 = vmatpush1.msra.mxu0 0.0
    %274 = vmatprep.subr.mxu0 0.0
    %275 = vmatpush1.msra.mxu0 0.0
    %276 = vmatprep.subr.mxu0 0.0
    %277 = vmatpush1.msra.mxu0 0.0
    %278 = vmatprep.subr.mxu0 0.0
    %279 = vmatpush1.msra.mxu0 0.0
    %280 = vmatprep.subr.mxu0 0.0
    %281 = vmatpush1.msra.mxu0 0.0
    %282 = vmatprep.subr.mxu0 0.0
    %283 = vmatpush1.msra.mxu0 0.0
    %284 = vmatprep.subr.mxu0 0.0
    %285 = vmatpush1.msra.mxu0 0.0
    %286 = vmatprep.subr.mxu0 0.0
    %287 = vmatpush1.msra.mxu0 0.0
    %288 = vmatprep.subr.mxu0 0.0
    %289 = vmatpush1.msra.mxu0 0.0
    %290 = vmatprep.subr.mxu0 0.0
    %291 = vmatpush1.msra.mxu0 0.0
    %292 = vmatprep.subr.mxu0 0.0
    %293 = vmatpush1.msra.mxu0 0.0
    %294 = vmatprep.subr.mxu0 0.0
    %295 = vmatpush1.msra.mxu0 0.0
    %296 = vmatprep.subr.mxu0 0.0
    %297 = vmatpush1.msra.mxu0 0.0
    %298 = vmatprep.subr.mxu0 0.0
    %299 = vmatpush1.msra.mxu0 0.0
    %300 = vmatprep.subr.mxu0 0.0
    %301 = vmatpush1.msra.mxu0 0.0
    %302 = vmatprep.subr.mxu0 0.0
    %303 = vmatpush1.msra.mxu0 0.0
    %304 = vmatprep.subr.mxu0 0.0
    %305 = vmatpush1.msra.mxu0 0.0
    %306 = vmatprep.subr.mxu0 0.0
    %307 = vmatpush1.msra.mxu0 0.0
    %308 = vmatprep.subr.mxu0 0.0
    %309 = vmatpush1.msra.mxu0 0.0
    %310 = vmatprep.subr.mxu0 0.0
    %311 = vmatpush1.msra.mxu0 0.0
    %312 = vmatprep.subr.mxu0 0.0
    %313 = vmatpush1.msra.mxu0 0.0
    %314 = vmatprep.mubr.f32.mxu0 0.0
    %315 = vmatmul.mubr.f32.gmra.mrb[0].mxu0 %v245
    %v316 = vpop.f32.mrb[0].mxu0
    %v317 = vadd.f32 0.0, %v316
    %v318 = vpop.f32.mrb[0].mxu0
    %319 = vmatprep.mubr.f32.mxu0 0.0
    %320 = vmatmul.mubr.f32.gmra.mrb[0].mxu0 %v248
    %v321 = vpop.f32.mrb[0].mxu0
    %v322 = vadd.f32 0.0, %v321
    %v323 = vpop.f32.mrb[0].mxu0
    %324 = vdwg.mxu0
    %vm325 = vcmask 261120
    %326 = vst.msk [vmem:[#allocation4] sm:$0xff] %vm325, %v317
    %327 = vst.msk [vmem:[#allocation4 + $0x8] sm:$0xff] %vm325, %v322
    %v328 = vld [vmem:[%s4] sm:$0xff]
    %329 = vmatprep.subr.mxu0 0.0
    %330 = vmatpush1.msra.mxu0 %v328
    %331 = vmatprep.subr.mxu0 0.0
    %332 = vmatpush1.msra.mxu0 0.0
    %333 = vmatprep.subr.mxu0 0.0
    %334 = vmatpush1.msra.mxu0 0.0
    %335 = vmatprep.subr.mxu0 0.0
    %336 = vmatpush1.msra.mxu0 0.0
    %337 = vmatprep.subr.mxu0 0.0
    %338 = vmatpush1.msra.mxu0 0.0
    %339 = vmatprep.subr.mxu0 0.0
    %340 = vmatpush1.msra.mxu0 0.0
    %341 = vmatprep.subr.mxu0 0.0
    %342 = vmatpush1.msra.mxu0 0.0
    %343 = vmatprep.subr.mxu0 0.0
    %344 = vmatpush1.msra.mxu0 0.0
    %345 = vmatprep.subr.mxu0 0.0
    %346 = vmatpush1.msra.mxu0 0.0
    %347 = vmatprep.subr.mxu0 0.0
    %348 = vmatpush1.msra.mxu0 0.0
    %349 = vmatprep.subr.mxu0 0.0
    %350 = vmatpush1.msra.mxu0 0.0
    %351 = vmatprep.subr.mxu0 0.0
    %352 = vmatpush1.msra.mxu0 0.0
    %353 = vmatprep.subr.mxu0 0.0
    %354 = vmatpush1.msra.mxu0 0.0
    %355 = vmatprep.subr.mxu0 0.0
    %356 = vmatpush1.msra.mxu0 0.0
    %357 = vmatprep.subr.mxu0 0.0
    %358 = vmatpush1.msra.mxu0 0.0
    %359 = vmatprep.subr.mxu0 0.0
    %360 = vmatpush1.msra.mxu0 0.0
    %361 = vmatprep.subr.mxu0 0.0
    %362 = vmatpush1.msra.mxu0 0.0
    %363 = vmatprep.subr.mxu0 0.0
    %364 = vmatpush1.msra.mxu0 0.0
    %365 = vmatprep.subr.mxu0 0.0
    %366 = vmatpush1.msra.mxu0 0.0
    %367 = vmatprep.subr.mxu0 0.0
    %368 = vmatpush1.msra.mxu0 0.0
    %369 = vmatprep.subr.mxu0 0.0
    %370 = vmatpush1.msra.mxu0 0.0
    %371 = vmatprep.subr.mxu0 0.0
    %372 = vmatpush1.msra.mxu0 0.0
    %373 = vmatprep.subr.mxu0 0.0
    %374 = vmatpush1.msra.mxu0 0.0
    %375 = vmatprep.subr.mxu0 0.0
    %376 = vmatpush1.msra.mxu0 0.0
    %377 = vmatprep.subr.mxu0 0.0
    %378 = vmatpush1.msra.mxu0 0.0
    %379 = vmatprep.subr.mxu0 0.0
    %380 = vmatpush1.msra.mxu0 0.0
    %381 = vmatprep.subr.mxu0 0.0
    %382 = vmatpush1.msra.mxu0 0.0
    %383 = vmatprep.subr.mxu0 0.0
    %384 = vmatpush1.msra.mxu0 0.0
    %385 = vmatprep.subr.mxu0 0.0
    %386 = vmatpush1.msra.mxu0 0.0
    %387 = vmatprep.subr.mxu0 0.0
    %388 = vmatpush1.msra.mxu0 0.0
    %389 = vmatprep.subr.mxu0 0.0
    %390 = vmatpush1.msra.mxu0 0.0
    %391 = vmatprep.subr.mxu0 0.0
    %392 = vmatpush1.msra.mxu0 0.0
    %393 = vmatprep.mubr.f32.mxu0 0.0
    %394 = vmatmul.mubr.f32.gmra.mrb[0].mxu0 %v245
    %v395 = vpop.f32.mrb[0].mxu0
    %v396 = vadd.f32 0.0, %v395
    %v397 = vpop.f32.mrb[0].mxu0
    %398 = vmatprep.mubr.f32.mxu0 0.0
    %399 = vmatmul.mubr.f32.gmra.mrb[0].mxu0 %v248
    %v400 = vpop.f32.mrb[0].mxu0
    %v401 = vadd.f32 0.0, %v400
    %v402 = vpop.f32.mrb[0].mxu0
    %403 = vdwg.mxu0
    %404 = vst.msk [vmem:[#allocation6] sm:$0xff] %vm325, %v396
    %405 = vst.msk [vmem:[#allocation6 + $0x8] sm:$0xff] %vm325, %v401
    %v406 = vld [vmem:[%s5] sm:$0xff]
    %407 = vmatprep.subr.mxu0 0.0
    %408 = vmatpush1.msra.mxu0 %v406
    %409 = vmatprep.subr.mxu0 0.0
    %410 = vmatpush1.msra.mxu0 0.0
    %411 = vmatprep.subr.mxu0 0.0
    %412 = vmatpush1.msra.mxu0 0.0
    %413 = vmatprep.subr.mxu0 0.0
    %414 = vmatpush1.msra.mxu0 0.0
    %415 = vmatprep.subr.mxu0 0.0
    %416 = vmatpush1.msra.mxu0 0.0
    %417 = vmatprep.subr.mxu0 0.0
    %418 = vmatpush1.msra.mxu0 0.0
    %419 = vmatprep.subr.mxu0 0.0
    %420 = vmatpush1.msra.mxu0 0.0
    %421 = vmatprep.subr.mxu0 0.0
    %422 = vmatpush1.msra.mxu0 0.0
    %423 = vmatprep.subr.mxu0 0.0
    %424 = vmatpush1.msra.mxu0 0.0
    %425 = vmatprep.subr.mxu0 0.0
    %426 = vmatpush1.msra.mxu0 0.0
    %427 = vmatprep.subr.mxu0 0.0
    %428 = vmatpush1.msra.mxu0 0.0
    %429 = vmatprep.subr.mxu0 0.0
    %430 = vmatpush1.msra.mxu0 0.0
    %431 = vmatprep.subr.mxu0 0.0
    %432 = vmatpush1.msra.mxu0 0.0
    %433 = vmatprep.subr.mxu0 0.0
    %434 = vmatpush1.msra.mxu0 0.0
    %435 = vmatprep.subr.mxu0 0.0
    %436 = vmatpush1.msra.mxu0 0.0
    %437 = vmatprep.subr.mxu0 0.0
    %438 = vmatpush1.msra.mxu0 0.0
    %439 = vmatprep.subr.mxu0 0.0
    %440 = vmatpush1.msra.mxu0 0.0
    %441 = vmatprep.subr.mxu0 0.0
    %442 = vmatpush1.msra.mxu0 0.0
    %443 = vmatprep.subr.mxu0 0.0
    %444 = vmatpush1.msra.mxu0 0.0
    %445 = vmatprep.subr.mxu0 0.0
    %446 = vmatpush1.msra.mxu0 0.0
    %447 = vmatprep.subr.mxu0 0.0
    %448 = vmatpush1.msra.mxu0 0.0
    %449 = vmatprep.subr.mxu0 0.0
    %450 = vmatpush1.msra.mxu0 0.0
    %451 = vmatprep.subr.mxu0 0.0
    %452 = vmatpush1.msra.mxu0 0.0
    %453 = vmatprep.subr.mxu0 0.0
    %454 = vmatpush1.msra.mxu0 0.0
    %455 = vmatprep.subr.mxu0 0.0
    %456 = vmatpush1.msra.mxu0 0.0
    %457 = vmatprep.subr.mxu0 0.0
    %458 = vmatpush1.msra.mxu0 0.0
    %459 = vmatprep.subr.mxu0 0.0
    %460 = vmatpush1.msra.mxu0 0.0
    %461 = vmatprep.subr.mxu0 0.0
    %462 = vmatpush1.msra.mxu0 0.0
    %463 = vmatprep.subr.mxu0 0.0
    %464 = vmatpush1.msra.mxu0 0.0
    %465 = vmatprep.subr.mxu0 0.0
    %466 = vmatpush1.msra.mxu0 0.0
    %467 = vmatprep.subr.mxu0 0.0
    %468 = vmatpush1.msra.mxu0 0.0
    %469 = vmatprep.subr.mxu0 0.0
    %470 = vmatpush1.msra.mxu0 0.0
    %471 = vmatprep.mubr.f32.mxu0 0.0
    %472 = vmatmul.mubr.f32.gmra.mrb[0].mxu0 %v245
    %v473 = vpop.f32.mrb[0].mxu0
    %v474 = vadd.f32 0.0, %v473
    %v475 = vpop.f32.mrb[0].mxu0
    %476 = vmatprep.mubr.f32.mxu0 0.0
    %477 = vmatmul.mubr.f32.gmra.mrb[0].mxu0 %v248
    %v478 = vpop.f32.mrb[0].mxu0
    %v479 = vadd.f32 0.0, %v478
    %v480 = vpop.f32.mrb[0].mxu0
    %481 = vdwg.mxu0
    %482 = vst.msk [vmem:[#allocation7] sm:$0xff] %vm325, %v474
    %483 = vst.msk [vmem:[#allocation7 + $0x8] sm:$0xff] %vm325, %v479
    // Predicated region
    $region26: #{tpu_custom_call.1} parent=1 // pred_check
      _
    $region27: #{tpu_custom_call.1} parent=1 // pred_check_branch
      %485 = sbr.rel (0) target = $region29
    $region28: #{tpu_custom_call.1} parent=1 // pred_region
      %s487 = ssub.s32 512, 512
      %488 = vsyncadd [#allocation3], %s487
      %s489 = sshll.u32 [#allocation2], 4
      %s490 = int_to_ptr.vmem [resolvable:$true] %s489
      %495 = dma.vmem_to_hbm [thread:$0]  %s490, 512, %s6, [#allocation3], 128, 128, 8
    $region29: #{tpu_custom_call.1} parent=1 // pred_fallthru
      _
    // Predicated region
    $region30: #{tpu_custom_call.1} parent=1 // pred_check
      _
    $region31: #{tpu_custom_call.1} parent=1 // pred_check_branch
      %497 = sbr.rel (0) target = $region33
    $region32: #{tpu_custom_call.1} parent=1 // pred_region
      %s499 = ssub.s32 256, 256
      %500 = vsyncadd [#allocation5], %s499
      %s501 = sshll.u32 [#allocation4], 4
      %s502 = int_to_ptr.vmem [resolvable:$true] %s501
      %507 = dma.vmem_to_hbm [thread:$0]  %s502, 256, %s7, [#allocation5], 128, 128, 8
    $region33: #{tpu_custom_call.1} parent=1 // pred_fallthru
      _
    // Predicated region
    $region34: #{tpu_custom_call.1} parent=1 // pred_check
      _
    $region35: #{tpu_custom_call.1} parent=1 // pred_check_branch
      %509 = sbr.rel (0) target = $region37
    $region36: #{tpu_custom_call.1} parent=1 // pred_region
      %s511 = ssub.s32 256, 256
      %512 = vsyncadd [#allocation5], %s511
      %s513 = sshll.u32 [#allocation6], 4
      %s514 = int_to_ptr.vmem [resolvable:$true] %s513
      %519 = dma.vmem_to_hbm [thread:$0]  %s514, 256, %s8, [#allocation5], 128, 128, 8
    $region37: #{tpu_custom_call.1} parent=1 // pred_fallthru
      _
    // Predicated region
    $region38: #{tpu_custom_call.1} parent=1 // pred_check
      _
    $region39: #{tpu_custom_call.1} parent=1 // pred_check_branch
      %521 = sbr.rel (0) target = $region41
    $region40: #{tpu_custom_call.1} parent=1 // pred_region
      %s523 = ssub.s32 256, 256
      %524 = vsyncadd [#allocation8], %s523
      %s525 = sshll.u32 [#allocation7], 4
      %s526 = int_to_ptr.vmem [resolvable:$true] %s525
      %531 = dma.vmem_to_hbm [thread:$0]  %s526, 256, %s9, [#allocation8], 128, 128, 8
    $region41: #{tpu_custom_call.1} parent=1 // pred_fallthru
      _
    // Predicated region
    $region42: #{tpu_custom_call.1} parent=1 // pred_check
      _
    $region43: #{tpu_custom_call.1} parent=1 // pred_check_branch
      %533 = sbr.rel (0) target = $region45
    $region44: #{tpu_custom_call.1} parent=1 // pred_region
      %534 = dma.done [#allocation3], 512
    $region45: #{tpu_custom_call.1} parent=1 // pred_fallthru
      _
    // Predicated region
    $region46: #{tpu_custom_call.1} parent=1 // pred_check
      _
    $region47: #{tpu_custom_call.1} parent=1 // pred_check_branch
      %536 = sbr.rel (0) target = $region49
    $region48: #{tpu_custom_call.1} parent=1 // pred_region
      %537 = dma.done [#allocation5], 256
    $region49: #{tpu_custom_call.1} parent=1 // pred_fallthru
      _
    // Predicated region
    $region50: #{tpu_custom_call.1} parent=1 // pred_check
      _
    $region51: #{tpu_custom_call.1} parent=1 // pred_check_branch
      %539 = sbr.rel (0) target = $region53
    $region52: #{tpu_custom_call.1} parent=1 // pred_region
      %540 = dma.done [#allocation5], 256
    $region53: #{tpu_custom_call.1} parent=1 // pred_fallthru
      _
    // Predicated region
    $region54: #{tpu_custom_call.1} parent=1 // pred_check
      _
    $region55: #{tpu_custom_call.1} parent=1 // pred_check_branch
      %542 = sbr.rel (0) target = $region57
    $region56: #{tpu_custom_call.1} parent=1 // pred_region
      %543 = dma.done [#allocation8], 256
    $region57: #{tpu_custom_call.1} parent=1 // pred_fallthru
      _
    %544 = vsyncpa [#allocation3], 1
    %545 = vsyncpa [#allocation5], 1
    %546 = vsyncpa [#allocation8], 1

</llo_original>
